<compile_context>
chip_gen: v7x
topology: tpu7x:2x2x1
jax: 0.10.0
libtpu: 0.0.40
codegen_flags: <defaults>
</compile_context>

<pallas_src>
import jax
import jax.numpy as jnp
from jax.experimental import pallas as pl
from jax.experimental.pallas import tpu as pltpu


def _round_up(x, m):
    return ((x + m - 1) // m) * m


def _pick_tn(v_pad, tn_max):
    """Largest multiple of 128 that is <= tn_max and divides v_pad."""
    tn = max(128, (min(tn_max, v_pad) // 128) * 128)
    while v_pad % tn != 0:
        tn -= 128
    return tn


def _lm_head_kernel_cached(x_ref, wh_ref, bh_ref, wo_ref, bo_ref, out_ref,
                           h_ref):
    """Multi-token-tile variant: hidden cached across the (inner, sequential)
    vocab axis.  Requires the vocab grid axis to be "arbitrary".

    x_ref : [TM, E]  bf16   (token tile)
    wh_ref: [E, H]   bf16   (resident)
    bh_ref: [1, H]   f32    (resident)
    wo_ref: [H, TN]  bf16   (vocab tile)
    bo_ref: [1, TN]  f32    (vocab tile)
    out_ref:[TM, TN] bf16
    h_ref : [TM, H]  bf16   VMEM scratch (hidden cached across vocab tiles)
    """
    @pl.when(pl.program_id(1) == 0)
    def _():
        h = jnp.dot(x_ref[...], wh_ref[...], preferred_element_type=jnp.float32)
        h_ref[...] = jnp.tanh(h + bh_ref[...]).astype(h_ref.dtype)

    logits = jnp.dot(h_ref[...], wo_ref[...], preferred_element_type=jnp.float32)
    out_ref[...] = (logits + bo_ref[...]).astype(out_ref.dtype)


def _lm_head_kernel_nocache(x_ref, wh_ref, bh_ref, wo_ref, bo_ref, out_ref):
    """Decode / single-token-tile variant: no cross-tile scratch, so every
    grid step is independent and both grid axes may be "parallel" (megacore
    splits the vocab dimension on v7x).  Recomputing h costs only ~E/TN extra
    MXU flops, which is free in the HBM/Wo-bound decode regime."""
    h = jnp.dot(x_ref[...], wh_ref[...], preferred_element_type=jnp.float32)
    h = jnp.tanh(h + bh_ref[...]).astype(x_ref.dtype)
    logits = jnp.dot(h, wo_ref[...], preferred_element_type=jnp.float32)
    out_ref[...] = (logits + bo_ref[...]).astype(out_ref.dtype)


def lm_logits_pallas(emb_flat, wh, bh, wo, bo, v_true, *,
                     tm_max=512, tn_max=2048, tn_decode_max=4096,
                     out_dtype=jnp.bfloat16):
    """logits = tanh(emb_flat @ wh + bh) @ wo + bo, tiled for TPU.

    emb_flat: [N, E] (cast to bf16 for the MXU)
    wh: [E, H] bf16 (pre-cast at init), bh: [1, H] f32
    wo: [H, V_pad] bf16, bo: [1, V_pad] f32, both pre-padded so V_pad % 128 == 0
    Returns out_dtype logits of shape [N, v_true] (f32 accumulation in-kernel).
    """
    n, e = emb_flat.shape
    h_dim = wh.shape[1]
    v_pad = wo.shape[1]

    # Token tile: multiple of 16 (bf16 sublane packing); vocab tile: lane-dense
    # multiple of 128 that divides the pre-padded vocab.
    tm = min(tm_max, _round_up(n, 16))
    n_pad = _round_up(n, tm)
    grid_m = n_pad // tm
    single_tile = grid_m == 1          # decode / predict_last regime

    tn = _pick_tn(v_pad, tn_decode_max if single_tile else tn_max)
    grid_n = v_pad // tn

    x = emb_flat.astype(jnp.bfloat16)
    if n_pad != n:
        x = jnp.pad(x, ((0, n_pad - n), (0, 0)))

    if single_tile:
        kernel = _lm_head_kernel_nocache
        scratch = []
        dims = ("parallel", "parallel")      # let v7x split the vocab axis
    else:
        kernel = _lm_head_kernel_cached
        scratch = [pltpu.VMEM((tm, h_dim), jnp.bfloat16)]
        dims = ("parallel", "arbitrary")     # vocab axis MUST be sequential
                                             # while h_ref cache is in play

    out_bytes = jnp.dtype(out_dtype).itemsize

    # VMEM footprint (double-buffered streamed operands + resident Wh/bh +
    # scratch), with headroom.  Explicit limit covers v5e's 16 MiB default
    # scoped VMEM; capped below v7x's 64 MiB physical VMEM.
    # TODO(synk): at real model sizes, single-buffer the never-changing Wh/bh
    # blocks (pipeline_mode=pl.Buffered(1)) to free VMEM headroom on v7x.
    footprint = (2 * tm * e * 2                      # x tiles (bf16)
                 + 2 * e * h_dim * 2                 # Wh (bf16, 2 bufs)
                 + 2 * h_dim * 4                     # bh
                 + 2 * (h_dim * tn * 2 + tn * 4)     # Wo + bo tiles
                 + 2 * tm * tn * out_bytes           # out tiles
                 + tm * h_dim * 2)                   # hidden scratch
    vmem_limit_bytes = int(min(64 << 20, max(footprint + (4 << 20), 16 << 20)))

    # Cost advisory: Wo / bo stream once per *token tile*; hidden matmul runs
    # once per token tile (cached) or once per grid step (nocache).
    hid_reps = grid_n if single_tile else 1
    flops = 2 * n_pad * e * h_dim * hid_reps + 2 * n_pad * h_dim * v_pad
    transcendentals = n_pad * h_dim * hid_reps
    bytes_accessed = (n_pad * e * 2                          # x (bf16)
                      + e * h_dim * 2 + h_dim * 4            # Wh + bh
                      + grid_m * (h_dim * v_pad * 2 + v_pad * 4)  # Wo + bo streamed
                      + n_pad * v_pad * out_bytes)           # logits writeback

    out = pl.pallas_call(
        kernel,
        out_shape=jax.ShapeDtypeStruct((n_pad, v_pad), out_dtype),
        grid_spec=pltpu.PrefetchScalarGridSpec(
            num_scalar_prefetch=0,
            grid=(grid_m, grid_n),
            in_specs=[
                pl.BlockSpec((tm, e), lambda i, j: (i, 0)),      # x token tile
                pl.BlockSpec((e, h_dim), lambda i, j: (0, 0)),   # Wh resident
                pl.BlockSpec((1, h_dim), lambda i, j: (0, 0)),   # bh resident
                pl.BlockSpec((h_dim, tn), lambda i, j: (0, j)),  # Wo vocab tile
                pl.BlockSpec((1, tn), lambda i, j: (0, j)),      # bo vocab tile
            ],
            out_specs=pl.BlockSpec((tm, tn), lambda i, j: (i, j)),
            scratch_shapes=scratch,
        ),
        compiler_params=pltpu.CompilerParams(
            dimension_semantics=dims,
            vmem_limit_bytes=vmem_limit_bytes),
        cost_estimate=pl.CostEstimate(
            flops=flops,
            transcendentals=transcendentals,
            bytes_accessed=bytes_accessed),
    )(x, wh, bh, wo, bo)

    if n_pad != n:
        out = out[:n]
    if v_pad != v_true:
        out = out[:, :v_true]
    return out


class SyntheticLM:
    """Small synthetic LM standing in for the wrapped neural_sp LM module.

    Dims are lane-aligned (multiples of 128).  All weight casts / vocab
    padding happen ONCE here (hoisted out of the per-call path).
    """

    def __init__(self, vocab=1024, emb_dim=128, hidden=128, key=None):
        if key is None:
            key = jax.random.PRNGKey(0)
        k1, k2, k3, k4, k5 = jax.random.split(key, 5)
        self.vocab = vocab
        self.emb_dim = emb_dim
        self.hidden = hidden
        self.v_pad = _round_up(vocab, 128)

        self.embed = (jax.random.normal(k1, (vocab, emb_dim), jnp.float32)
                      * 0.1).astype(jnp.bfloat16)
        self.w_h = (jax.random.normal(k2, (emb_dim, hidden), jnp.float32)
                    * 0.1).astype(jnp.bfloat16)
        self.b_h = jax.random.normal(k3, (1, hidden), jnp.float32) * 0.01
        w_o = jax.random.normal(k4, (hidden, vocab), jnp.float32) * 0.1
        b_o = jax.random.normal(k5, (1, vocab), jnp.float32) * 0.01
        # Pre-padded, pre-cast output head (no per-call pad / post-kernel V slice).
        self.w_o = jnp.pad(w_o, ((0, 0), (0, self.v_pad - vocab))).astype(jnp.bfloat16)
        self.b_o = jnp.pad(b_o, ((0, 0), (0, self.v_pad - vocab))).astype(jnp.float32)
        # TODO(synk): for decode throughput, quantize w_o to int8 (v5e/v6e) or
        # fp8 (v7x) with per-column scales and rescale after the MXU accumulate.

    def __call__(self, ys, state=None, is_eval=False, n_caches=0, ylens=[],
                 predict_last=False):
        if predict_last:
            # Incremental-decoding fast path: only the last token per sequence
            # goes through the LM head (N = B instead of B*T).
            ys = ys[:, -1:]
        b, t = ys.shape
        # TODO(synk): fuse this gather into the kernel (scalar-prefetched token
        # ids + per-row DMA from an HBM-resident table) to remove the [N,E]
        # embedding-slab HBM round trip and the extra XLA launch.
        emb = jnp.take(self.embed, ys.reshape(-1), axis=0)
        logits_flat = lm_logits_pallas(emb, self.w_h, self.b_h,
                                       self.w_o, self.b_o, self.vocab)
        logits = logits_flat.reshape(b, t, self.vocab)
        # TODO(synk): n_caches / cache-based interpolation needs the concrete
        # neural_sp LM internals; state is passed through unchanged.
        return logits, state


class CPUWrapperLM:
    """JAX mirror of neural_sp CPUWrapperLM: pure delegation to self.module."""

    def __init__(self, model):
        self.module = model

    def forward(self, ys, state=None, is_eval=False, n_caches=0, ylens=[],
                predict_last=False):
        return self.module(ys, state, is_eval, n_caches, ylens, predict_last)

    __call__ = forward


if __name__ == "__main__":
    key = jax.random.PRNGKey(0)
    k_tok, k_par = jax.random.split(key)

    B, T = 2, 16
    VOCAB, EMB, HID = 1024, 128, 128
    ys = jax.random.randint(k_tok, (B, T), 0, VOCAB, dtype=jnp.int32)

    lm = SyntheticLM(vocab=VOCAB, emb_dim=EMB, hidden=HID, key=k_par)
    wrapper = CPUWrapperLM(lm)

    logits, state = wrapper(ys, state=None, is_eval=True, n_caches=0,
                            ylens=[T, T], predict_last=False)
    logits = jax.block_until_ready(logits)
    assert logits.shape == (B, T, VOCAB)
    assert state is None

    # Plain-JAX reference with the same bf16 operands, f32 math.
    emb = jnp.take(lm.embed, ys.reshape(-1), axis=0).astype(jnp.float32)
    ref_h = jnp.tanh(emb @ lm.w_h.astype(jnp.float32) + lm.b_h)
    ref_h = ref_h.astype(jnp.bfloat16).astype(jnp.float32)
    ref = (ref_h @ lm.w_o.astype(jnp.float32)
           + lm.b_o)[:, :VOCAB].reshape(B, T, VOCAB)
    assert jnp.max(jnp.abs(logits.astype(jnp.float32) - ref)) < 7.5e-3

    # Exercise the predict_last / decode fast path (single token tile,
    # nocache kernel, vocab axis parallel).
    last_logits, _ = wrapper(ys, predict_last=True)
    last_logits = jax.block_until_ready(last_logits)
    assert last_logits.shape == (B, 1, VOCAB)
    assert jnp.max(jnp.abs(last_logits[:, 0].astype(jnp.float32)
                           - ref[:, -1])) < 7.5e-3

    # Exercise the multi-token-tile variant (hidden cached in VMEM scratch,
    # vocab axis "arbitrary") by forcing small tiles.
    emb_bf = jnp.take(lm.embed, ys.reshape(-1), axis=0)
    tiled = lm_logits_pallas(emb_bf, lm.w_h, lm.b_h, lm.w_o, lm.b_o, VOCAB,
                             tm_max=16, tn_max=512)
    tiled = jax.block_until_ready(tiled)
    assert tiled.shape == (B * T, VOCAB)
    assert jnp.max(jnp.abs(tiled.astype(jnp.float32).reshape(B, T, VOCAB)
                           - ref)) < 7.5e-3

    print("KERNEL_OK")
</pallas_src>

<mosaic_0001>
module attributes {stable_mosaic.version = 11 : i64} {
  func.func @_lm_head_kernel_nocache(%arg0: i32, %arg1: i32, %arg2: memref<32x128xbf16, #tpu.memory_space<vmem>>, %arg3: memref<128x128xbf16, #tpu.memory_space<vmem>>, %arg4: memref<1x128xf32, #tpu.memory_space<vmem>>, %arg5: memref<128x1024xbf16, #tpu.memory_space<vmem>>, %arg6: memref<1x1024xf32, #tpu.memory_space<vmem>>, %arg7: memref<32x1024xbf16, #tpu.memory_space<vmem>>) attributes {dimension_semantics = [#tpu.dimension_semantics<parallel>, #tpu.dimension_semantics<parallel>], iteration_bounds = array<i64: 1, 1>, scalar_prefetch = 0 : i64, scratch_operands = 0 : i64, tpu.core_type = #tpu.core_type<tc>, window_params = [{transform_indices = @transform_0, window_bounds = array<i64: 32, 128>}, {pipeline_mode = #tpu.pipeline_mode<synchronous>, transform_indices = @transform_1, window_bounds = array<i64: 128, 128>}, {pipeline_mode = #tpu.pipeline_mode<synchronous>, transform_indices = @transform_2, window_bounds = array<i64: 1, 128>}, {transform_indices = @transform_3, window_bounds = array<i64: 128, 1024>}, {transform_indices = @transform_4, window_bounds = array<i64: 1, 1024>}, {transform_indices = @transform_5, window_bounds = array<i64: 32, 1024>}]} {
    %c0 = arith.constant 0 : index
    %c0_0 = arith.constant 0 : index
    %0 = vector.load %arg2[%c0, %c0_0] : memref<32x128xbf16, #tpu.memory_space<vmem>>, vector<32x128xbf16>
    %c0_1 = arith.constant 0 : index
    %c0_2 = arith.constant 0 : index
    %1 = vector.load %arg3[%c0_1, %c0_2] : memref<128x128xbf16, #tpu.memory_space<vmem>>, vector<128x128xbf16>
    %cst = arith.constant dense<0.000000e+00> : vector<32x128xf32>
    %2 = tpu.matmul %0, %1, %cst {dimension_numbers = #tpu.dot_dimension_numbers<[1], [0], [0], [1], [0, 0, 1, 1], [], []>} : vector<32x128xbf16>, vector<128x128xbf16>, vector<32x128xf32> -> vector<32x128xf32>
    %c0_3 = arith.constant 0 : index
    %c0_4 = arith.constant 0 : index
    %3 = vector.load %arg4[%c0_3, %c0_4] : memref<1x128xf32, #tpu.memory_space<vmem>>, vector<1x128xf32>
    %4 = vector.broadcast %3 : vector<1x128xf32> to vector<32x128xf32>
    %5 = arith.addf %2, %4 : vector<32x128xf32>
    %6 = math.tanh %5 : vector<32x128xf32>
    %7 = arith.truncf %6 : vector<32x128xf32> to vector<32x128xbf16>
    %c0_5 = arith.constant 0 : index
    %c0_6 = arith.constant 0 : index
    %8 = vector.load %arg5[%c0_5, %c0_6] : memref<128x1024xbf16, #tpu.memory_space<vmem>>, vector<128x1024xbf16>
    %cst_7 = arith.constant dense<0.000000e+00> : vector<32x1024xf32>
    %9 = tpu.matmul %7, %8, %cst_7 {dimension_numbers = #tpu.dot_dimension_numbers<[1], [0], [0], [1], [0, 0, 1, 1], [], []>} : vector<32x128xbf16>, vector<128x1024xbf16>, vector<32x1024xf32> -> vector<32x1024xf32>
    %c0_8 = arith.constant 0 : index
    %c0_9 = arith.constant 0 : index
    %10 = vector.load %arg6[%c0_8, %c0_9] : memref<1x1024xf32, #tpu.memory_space<vmem>>, vector<1x1024xf32>
    %11 = vector.broadcast %10 : vector<1x1024xf32> to vector<32x1024xf32>
    %12 = arith.addf %9, %11 : vector<32x1024xf32>
    %13 = arith.truncf %12 : vector<32x1024xf32> to vector<32x1024xbf16>
    %c0_10 = arith.constant 0 : index
    %c0_11 = arith.constant 0 : index
    %14 = vector.load %arg7[%c0_10, %c0_11] : memref<32x1024xbf16, #tpu.memory_space<vmem>>, vector<32x1024xbf16>
    tpu.vector_store %arg7[%c0_10, %c0_11], %13 {strides = array<i32>} : memref<32x1024xbf16, #tpu.memory_space<vmem>>, vector<32x1024xbf16>,
    return
  }
  func.func @transform_0(%arg0: i32, %arg1: i32) -> (i32, i32) {
    %c0_i32 = arith.constant 0 : i32
    %c0_i32_0 = arith.constant 0 : i32
    return %arg0, %c0_i32 : i32, i32
  }
  func.func @transform_1(%arg0: i32, %arg1: i32) -> (i32, i32) {
    %c0_i32 = arith.constant 0 : i32
    %c0_i32_0 = arith.constant 0 : i32
    %c0_i32_1 = arith.constant 0 : i32
    return %c0_i32, %c0_i32_0 : i32, i32
  }
  func.func @transform_2(%arg0: i32, %arg1: i32) -> (i32, i32) {
    %c0_i32 = arith.constant 0 : i32
    %c0_i32_0 = arith.constant 0 : i32
    %c0_i32_1 = arith.constant 0 : i32
    return %c0_i32, %c0_i32_0 : i32, i32
  }
  func.func @transform_3(%arg0: i32, %arg1: i32) -> (i32, i32) {
    %c0_i32 = arith.constant 0 : i32
    %c0_i32_0 = arith.constant 0 : i32
    return %c0_i32, %arg1 : i32, i32
  }
  func.func @transform_4(%arg0: i32, %arg1: i32) -> (i32, i32) {
    %c0_i32 = arith.constant 0 : i32
    %c0_i32_0 = arith.constant 0 : i32
    return %c0_i32, %arg1 : i32, i32
  }
  func.func @transform_5(%arg0: i32, %arg1: i32) -> (i32, i32) {
    %c0_i32 = arith.constant 0 : i32
    return %arg0, %arg1 : i32, i32
  }
}

</mosaic_0001>

<llo_original>
// kernel: tpu_custom_call.1
$region0: #{tpu_custom_call.1}
  #allocation0 [shape = 'u32[]', space=smem, size = 0x4, offset = 0x4, fixed_abs, tag = 'smem constant byte address 0x4 - core index']
  #allocation1 [shape = 'u32[144,128]{1,0:T(1,128)}', space=vmem, size = 0x12000, scoped, tag = 'internal scratch']
  %s0 = inlined_call_operand.hbm [shape: bf16[32,128], index: 0, kind: input, shape index: {}]
  %s1 = inlined_call_operand.hbm [shape: bf16[128,128], index: 1, kind: input, shape index: {}]
  %s2 = inlined_call_operand.vmem [shape: f32[1,128], index: 2, kind: input, shape index: {}]
  %s3 = inlined_call_operand.hbm [shape: bf16[128,1024], index: 3, kind: input, shape index: {}]
  %s4 = inlined_call_operand.vmem [shape: f32[1,1024], index: 4, kind: input, shape index: {}]
  %s5 = inlined_call_operand.hbm [shape: bf16[32,1024], index: 5, kind: output, shape index: {}]
  %s6 = sld [smem:[#allocation0]]
  $region42: #{tpu_custom_call.1} parent=0
    _
  %s8 = ssub.s32 1, %s6
  %s9 = scalar_select 0, %s8, %s6
  $region1: #{tpu_custom_call.1} parent=0
    #allocation2 [shape = 'u8[8192]{0}', space=vmem, size = 0x2000, scoped, tag = 'input window, operand 0, single buffered']
    #allocation3 [shape = 's32[1]{0}', space=sflag, size = 0x4, scoped, tag = 'scoped memory for tpu_custom_call.1']
    #allocation4 [shape = 's32[1]{0}', space=sflag, size = 0x4, scoped, tag = 'scoped memory for tpu_custom_call.1']
    #allocation5 [shape = 'u8[32768]{0}', space=vmem, size = 0x8000, scoped, tag = 'input window, operand 1, single buffered']
    #allocation6 [shape = 's32[1]{0}', space=sflag, size = 0x4, scoped, tag = 'scoped memory for tpu_custom_call.1']
    #allocation7 [shape = 'u8[262144]{0}', space=vmem, size = 0x40000, scoped, tag = 'input window, operand 3, single buffered']
    #allocation8 [shape = 'u8[65536]{0}', space=vmem, size = 0x10000, scoped, tag = 'output window, operand 0, single buffered']
    %10 = vsyncpa [#allocation3], 0
    %11 = vsyncpa [#allocation6], 0
    %12 = vsyncpa [#allocation4], 0
    // Predicated region
    $region2: #{tpu_custom_call.1} parent=1 // pred_check
      _
    $region3: #{tpu_custom_call.1} parent=1 // pred_check_branch
      %14 = sbr.rel (0) target = $region5
    $region4: #{tpu_custom_call.1} parent=1 // pred_region
      %s16 = ssub.s32 256, 256
      %17 = vsyncadd [#allocation3], %s16
      %s18 = sshll.u32 [#allocation2], 4
      %s19 = int_to_ptr.vmem [resolvable:$true] %s18
      %24 = dma.hbm_to_vmem [thread:$0]  %s0, 256, %s19, [#allocation3], 64, 64, 4
    $region5: #{tpu_custom_call.1} parent=1 // pred_fallthru
      _
    // Predicated region
    $region6: #{tpu_custom_call.1} parent=1 // pred_check
      _
    $region7: #{tpu_custom_call.1} parent=1 // pred_check_branch
      %26 = sbr.rel (0) target = $region9
    $region8: #{tpu_custom_call.1} parent=1 // pred_region
      %s28 = ssub.s32 1024, 1024
      %29 = vsyncadd [#allocation6], %s28
      %s30 = sshll.u32 [#allocation5], 4
      %s31 = int_to_ptr.vmem [resolvable:$true] %s30
      %36 = dma.hbm_to_vmem [thread:$0]  %s1, 1024, %s31, [#allocation6], 64, 64, 4
    $region9: #{tpu_custom_call.1} parent=1 // pred_fallthru
      _
    // Predicated region
    $region10: #{tpu_custom_call.1} parent=1 // pred_check
      _
    $region11: #{tpu_custom_call.1} parent=1 // pred_check_branch
      %38 = sbr.rel (0) target = $region13
    $region12: #{tpu_custom_call.1} parent=1 // pred_region
      _
    $region13: #{tpu_custom_call.1} parent=1 // pred_fallthru
      _
    // Predicated region
    $region14: #{tpu_custom_call.1} parent=1 // pred_check
      _
    $region15: #{tpu_custom_call.1} parent=1 // pred_check_branch
      %40 = sbr.rel (0) target = $region17
    $region16: #{tpu_custom_call.1} parent=1 // pred_region
      %s42 = ssub.s32 8192, 8192
      %43 = vsyncadd [#allocation6], %s42
      %s44 = sshll.u32 [#allocation7], 4
      %s45 = int_to_ptr.vmem [resolvable:$true] %s44
      %50 = dma.hbm_to_vmem [thread:$0]  %s3, 8192, %s45, [#allocation6], 512, 512, 32
    $region17: #{tpu_custom_call.1} parent=1 // pred_fallthru
      _
    // Predicated region
    $region18: #{tpu_custom_call.1} parent=1 // pred_check
      _
    $region19: #{tpu_custom_call.1} parent=1 // pred_check_branch
      %52 = sbr.rel (0) target = $region21
    $region20: #{tpu_custom_call.1} parent=1 // pred_region
      _
    $region21: #{tpu_custom_call.1} parent=1 // pred_fallthru
      _
    // Predicated region
    $region22: #{tpu_custom_call.1} parent=1 // pred_check
      _
    $region23: #{tpu_custom_call.1} parent=1 // pred_check_branch
      %54 = sbr.rel (0) target = $region25
    $region24: #{tpu_custom_call.1} parent=1 // pred_region
      %55 = dma.done [#allocation3], 256
    $region25: #{tpu_custom_call.1} parent=1 // pred_fallthru
      _
    // Predicated region
    $region26: #{tpu_custom_call.1} parent=1 // pred_check
      _
    $region27: #{tpu_custom_call.1} parent=1 // pred_check_branch
      %57 = sbr.rel (0) target = $region29
    $region28: #{tpu_custom_call.1} parent=1 // pred_region
      %58 = dma.done [#allocation6], 1024
    $region29: #{tpu_custom_call.1} parent=1 // pred_fallthru
      _
    // Predicated region
    $region30: #{tpu_custom_call.1} parent=1 // pred_check
      _
    $region31: #{tpu_custom_call.1} parent=1 // pred_check_branch
      %60 = sbr.rel (0) target = $region33
    $region32: #{tpu_custom_call.1} parent=1 // pred_region
      %61 = dma.done [#allocation6], 8192
    $region33: #{tpu_custom_call.1} parent=1 // pred_fallthru
      _
    %v63 = vld [vmem:[#allocation2] sm:$0xf]
    %v64 = vld [vmem:[#allocation2 + $0x4] sm:$0xf]
    %v65 = vld [vmem:[#allocation2 + $0x8] sm:$0xf]
    %v66 = vld [vmem:[#allocation2 + $0xc] sm:$0xf]
    %v67 = vld [vmem:[#allocation5] sm:$0xf]
    %v68 = vld [vmem:[#allocation5 + $0x4] sm:$0xf]
    %v69 = vld [vmem:[#allocation5 + $0x8] sm:$0xf]
    %v70 = vld [vmem:[#allocation5 + $0xc] sm:$0xf]
    %v71 = vld [vmem:[#allocation5 + $0x10] sm:$0xf]
    %v72 = vld [vmem:[#allocation5 + $0x14] sm:$0xf]
    %v73 = vld [vmem:[#allocation5 + $0x18] sm:$0xf]
    %v74 = vld [vmem:[#allocation5 + $0x1c] sm:$0xf]
    %v75 = vld [vmem:[#allocation5 + $0x20] sm:$0xf]
    %v76 = vld [vmem:[#allocation5 + $0x24] sm:$0xf]
    %v77 = vld [vmem:[#allocation5 + $0x28] sm:$0xf]
    %v78 = vld [vmem:[#allocation5 + $0x2c] sm:$0xf]
    %v79 = vld [vmem:[#allocation5 + $0x30] sm:$0xf]
    %v80 = vld [vmem:[#allocation5 + $0x34] sm:$0xf]
    %v81 = vld [vmem:[#allocation5 + $0x38] sm:$0xf]
    %v82 = vld [vmem:[#allocation5 + $0x3c] sm:$0xf]
    %v83 = vld [vmem:[%s2] sm:$0x1]
    %v85 = vlaneseq
    %v86 = vshrl.u32 %v85, 7
    %v87 = vsub.s32 0, %v86
    %v88 = vrot.slane %v83, %v87
    %v94 = vunpack.c.l.b16 %v63
    %v95 = vunpack.c.l.b16 %v64
    %v96 = vunpack.c.l.b16 %v65
    %v97 = vunpack.c.l.b16 %v66
    %v98 = vpack.c.b16 %v95, %v94
    %v99 = vpack.c.b16 %v97, %v96
    %v118 = vunpack.c.l.b16 %v67
    %v119 = vunpack.c.l.b16 %v68
    %v120 = vunpack.c.l.b16 %v69
    %v121 = vunpack.c.l.b16 %v70
    %v122 = vunpack.c.l.b16 %v71
    %v123 = vunpack.c.l.b16 %v72
    %v124 = vunpack.c.l.b16 %v73
    %v125 = vunpack.c.l.b16 %v74
    %v126 = vunpack.c.l.b16 %v75
    %v127 = vunpack.c.l.b16 %v76
    %v128 = vunpack.c.l.b16 %v77
    %v129 = vunpack.c.l.b16 %v78
    %v130 = vunpack.c.l.b16 %v79
    %v131 = vunpack.c.l.b16 %v80
    %v132 = vunpack.c.l.b16 %v81
    %v133 = vunpack.c.l.b16 %v82
    %v134 = vpack.c.b16 %v119, %v118
    %v135 = vpack.c.b16 %v121, %v120
    %v136 = vpack.c.b16 %v123, %v122
    %v137 = vpack.c.b16 %v125, %v124
    %v138 = vpack.c.b16 %v127, %v126
    %v139 = vpack.c.b16 %v129, %v128
    %v140 = vpack.c.b16 %v131, %v130
    %v141 = vpack.c.b16 %v133, %v132
    %150 = vmatprep.subr.bf16.mxu0 0
    %151 = vmatpush1.bf16.msra.mxu0 %v134
    %152 = vmatprep.subr.bf16.mxu0 0
    %153 = vmatpush1.bf16.msra.mxu0 %v135
    %154 = vmatprep.subr.bf16.mxu0 0
    %155 = vmatpush1.bf16.msra.mxu0 %v136
    %156 = vmatprep.subr.bf16.mxu0 0
    %157 = vmatpush1.bf16.msra.mxu0 %v137
    %158 = vmatprep.subr.bf16.mxu0 0
    %159 = vmatpush1.bf16.msra.mxu0 %v138
    %160 = vmatprep.subr.bf16.mxu0 0
    %161 = vmatpush1.bf16.msra.mxu0 %v139
    %162 = vmatprep.subr.bf16.mxu0 0
    %163 = vmatpush1.bf16.msra.mxu0 %v140
    %164 = vmatprep.subr.bf16.mxu0 0
    %165 = vmatpush1.bf16.msra.mxu0 %v141
    %166 = vmatprep.subr.bf16.mxu0 0
    %167 = vmatpush1.bf16.msra.mxu0 0
    %168 = vmatprep.subr.bf16.mxu0 0
    %169 = vmatpush1.bf16.msra.mxu0 0
    %170 = vmatprep.subr.bf16.mxu0 0
    %171 = vmatpush1.bf16.msra.mxu0 0
    %172 = vmatprep.subr.bf16.mxu0 0
    %173 = vmatpush1.bf16.msra.mxu0 0
    %174 = vmatprep.subr.bf16.mxu0 0
    %175 = vmatpush1.bf16.msra.mxu0 0
    %176 = vmatprep.subr.bf16.mxu0 0
    %177 = vmatpush1.bf16.msra.mxu0 0
    %178 = vmatprep.subr.bf16.mxu0 0
    %179 = vmatpush1.bf16.msra.mxu0 0
    %180 = vmatprep.subr.bf16.mxu0 0
    %181 = vmatpush1.bf16.msra.mxu0 0
    %182 = vmatprep.mubr.bf16.mxu0 0
    %183 = vmatmul.mubr.bf16.gmra.mrb[0].mxu0 %v98
    %v184 = vpop.f32.mrb[0].mxu0
    %v185 = vadd.f32 %v88, %v184
    %v186 = vpop.f32.mrb[0].mxu0
    %v187 = vpop.f32.mrb[0].mxu0
    %v188 = vadd.f32 %v88, %v187
    %v189 = vpop.f32.mrb[0].mxu0
    %190 = vmatprep.mubr.bf16.mxu0 0
    %191 = vmatmul.mubr.bf16.gmra.mrb[0].mxu0 %v99
    %v192 = vpop.f32.mrb[0].mxu0
    %v193 = vadd.f32 %v88, %v192
    %v194 = vpop.f32.mrb[0].mxu0
    %v195 = vpop.f32.mrb[0].mxu0
    %v196 = vadd.f32 %v88, %v195
    %v197 = vpop.f32.mrb[0].mxu0
    %198 = vdwg.mxu0
    %v199 = vtanh.pop %v185
    %v200 = vtanh.pop %v188
    %v201 = vtanh.pop %v193
    %v202 = vtanh.pop %v196
    %v203 = vpack.c.bf16 %v200, %v199
    %v204 = vpack.c.bf16 %v202, %v201
    %v205 = vld [vmem:[#allocation7] sm:$0xff]
    %v206 = vld [vmem:[#allocation7 + $0x8] sm:$0xff]
    %v207 = vld [vmem:[#allocation7 + $0x10] sm:$0xff]
    %v208 = vld [vmem:[#allocation7 + $0x18] sm:$0xff]
    %v209 = vld [vmem:[#allocation7 + $0x20] sm:$0xff]
    %v210 = vld [vmem:[#allocation7 + $0x28] sm:$0xff]
    %v211 = vld [vmem:[#allocation7 + $0x30] sm:$0xff]
    %v212 = vld [vmem:[#allocation7 + $0x38] sm:$0xff]
    %v213 = vld [vmem:[#allocation7 + $0x40] sm:$0xff]
    %v214 = vld [vmem:[#allocation7 + $0x48] sm:$0xff]
    %v215 = vld [vmem:[#allocation7 + $0x50] sm:$0xff]
    %v216 = vld [vmem:[#allocation7 + $0x58] sm:$0xff]
    %v217 = vld [vmem:[#allocation7 + $0x60] sm:$0xff]
    %v218 = vld [vmem:[#allocation7 + $0x68] sm:$0xff]
    %v219 = vld [vmem:[#allocation7 + $0x70] sm:$0xff]
    %v220 = vld [vmem:[#allocation7 + $0x78] sm:$0xff]
    %v221 = vld [vmem:[#allocation7 + $0x80] sm:$0xff]
    %v222 = vld [vmem:[#allocation7 + $0x88] sm:$0xff]
    %v223 = vld [vmem:[#allocation7 + $0x90] sm:$0xff]
    %v224 = vld [vmem:[#allocation7 + $0x98] sm:$0xff]
    %v225 = vld [vmem:[#allocation7 + $0xa0] sm:$0xff]
    %v226 = vld [vmem:[#allocation7 + $0xa8] sm:$0xff]
    %v227 = vld [vmem:[#allocation7 + $0xb0] sm:$0xff]
    %v228 = vld [vmem:[#allocation7 + $0xb8] sm:$0xff]
    %v229 = vld [vmem:[#allocation7 + $0xc0] sm:$0xff]
    %v230 = vld [vmem:[#allocation7 + $0xc8] sm:$0xff]
    %v231 = vld [vmem:[#allocation7 + $0xd0] sm:$0xff]
    %v232 = vld [vmem:[#allocation7 + $0xd8] sm:$0xff]
    %v233 = vld [vmem:[#allocation7 + $0xe0] sm:$0xff]
    %v234 = vld [vmem:[#allocation7 + $0xe8] sm:$0xff]
    %v235 = vld [vmem:[#allocation7 + $0xf0] sm:$0xff]
    %v236 = vld [vmem:[#allocation7 + $0xf8] sm:$0xff]
    %v237 = vld [vmem:[#allocation7 + $0x100] sm:$0xff]
    %v238 = vld [vmem:[#allocation7 + $0x108] sm:$0xff]
    %v239 = vld [vmem:[#allocation7 + $0x110] sm:$0xff]
    %v240 = vld [vmem:[#allocation7 + $0x118] sm:$0xff]
    %v241 = vld [vmem:[#allocation7 + $0x120] sm:$0xff]
    %v242 = vld [vmem:[#allocation7 + $0x128] sm:$0xff]
    %v243 = vld [vmem:[#allocation7 + $0x130] sm:$0xff]
    %v244 = vld [vmem:[#allocation7 + $0x138] sm:$0xff]
    %v245 = vld [vmem:[#allocation7 + $0x140] sm:$0xff]
    %v246 = vld [vmem:[#allocation7 + $0x148] sm:$0xff]
    %v247 = vld [vmem:[#allocation7 + $0x150] sm:$0xff]
    %v248 = vld [vmem:[#allocation7 + $0x158] sm:$0xff]
    %v249 = vld [vmem:[#allocation7 + $0x160] sm:$0xff]
    %v250 = vld [vmem:[#allocation7 + $0x168] sm:$0xff]
    %v251 = vld [vmem:[#allocation7 + $0x170] sm:$0xff]
    %v252 = vld [vmem:[#allocation7 + $0x178] sm:$0xff]
    %v253 = vld [vmem:[#allocation7 + $0x180] sm:$0xff]
    %v254 = vld [vmem:[#allocation7 + $0x188] sm:$0xff]
    %v255 = vld [vmem:[#allocation7 + $0x190] sm:$0xff]
    %v256 = vld [vmem:[#allocation7 + $0x198] sm:$0xff]
    %v257 = vld [vmem:[#allocation7 + $0x1a0] sm:$0xff]
    %v258 = vld [vmem:[#allocation7 + $0x1a8] sm:$0xff]
    %v259 = vld [vmem:[#allocation7 + $0x1b0] sm:$0xff]
    %v260 = vld [vmem:[#allocation7 + $0x1b8] sm:$0xff]
    %v261 = vld [vmem:[#allocation7 + $0x1c0] sm:$0xff]
    %v262 = vld [vmem:[#allocation7 + $0x1c8] sm:$0xff]
    %v263 = vld [vmem:[#allocation7 + $0x1d0] sm:$0xff]
    %v264 = vld [vmem:[#allocation7 + $0x1d8] sm:$0xff]
    %v265 = vld [vmem:[#allocation7 + $0x1e0] sm:$0xff]
    %v266 = vld [vmem:[#allocation7 + $0x1e8] sm:$0xff]
    %v267 = vld [vmem:[#allocation7 + $0x1f0] sm:$0xff]
    %v268 = vld [vmem:[#allocation7 + $0x1f8] sm:$0xff]
    %v269 = vld [vmem:[%s4] sm:$0xff]
    %v271 = vlaneseq
    %v272 = vshrl.u32 %v271, 7
    %v273 = vsub.s32 0, %v272
    %v274 = vrot.slane %v269, %v273
    %v275 = vlaneseq
    %v276 = vshrl.u32 %v275, 7
    %v277 = vsub.s32 1, %v276
    %v278 = vrot.slane %v269, %v277
    %v279 = vlaneseq
    %v280 = vshrl.u32 %v279, 7
    %v281 = vsub.s32 2, %v280
    %v282 = vrot.slane %v269, %v281
    %v283 = vlaneseq
    %v284 = vshrl.u32 %v283, 7
    %v285 = vsub.s32 3, %v284
    %v286 = vrot.slane %v269, %v285
    %v287 = vlaneseq
    %v288 = vshrl.u32 %v287, 7
    %v289 = vsub.s32 4, %v288
    %v290 = vrot.slane %v269, %v289
    %v291 = vlaneseq
    %v292 = vshrl.u32 %v291, 7
    %v293 = vsub.s32 5, %v292
    %v294 = vrot.slane %v269, %v293
    %v295 = vlaneseq
    %v296 = vshrl.u32 %v295, 7
    %v297 = vsub.s32 6, %v296
    %v298 = vrot.slane %v269, %v297
    %v299 = vlaneseq
    %v300 = vshrl.u32 %v299, 7
    %v301 = vsub.s32 7, %v300
    %v302 = vrot.slane %v269, %v301
    %v375 = vunpack.c.l.b16 %v205
    %v376 = vunpack.c.h.b16 %v205
    %v377 = vunpack.c.l.b16 %v206
    %v378 = vunpack.c.h.b16 %v206
    %v379 = vunpack.c.l.b16 %v207
    %v380 = vunpack.c.h.b16 %v207
    %v381 = vunpack.c.l.b16 %v208
    %v382 = vunpack.c.h.b16 %v208
    %v383 = vunpack.c.l.b16 %v209
    %v384 = vunpack.c.h.b16 %v209
    %v385 = vunpack.c.l.b16 %v210
    %v386 = vunpack.c.h.b16 %v210
    %v387 = vunpack.c.l.b16 %v211
    %v388 = vunpack.c.h.b16 %v211
    %v389 = vunpack.c.l.b16 %v212
    %v390 = vunpack.c.h.b16 %v212
    %v391 = vunpack.c.l.b16 %v213
    %v392 = vunpack.c.h.b16 %v213
    %v393 = vunpack.c.l.b16 %v214
    %v394 = vunpack.c.h.b16 %v214
    %v395 = vunpack.c.l.b16 %v215
    %v396 = vunpack.c.h.b16 %v215
    %v397 = vunpack.c.l.b16 %v216
    %v398 = vunpack.c.h.b16 %v216
    %v399 = vunpack.c.l.b16 %v217
    %v400 = vunpack.c.h.b16 %v217
    %v401 = vunpack.c.l.b16 %v218
    %v402 = vunpack.c.h.b16 %v218
    %v403 = vunpack.c.l.b16 %v219
    %v404 = vunpack.c.h.b16 %v219
    %v405 = vunpack.c.l.b16 %v220
    %v406 = vunpack.c.h.b16 %v220
    %v407 = vunpack.c.l.b16 %v221
    %v408 = vunpack.c.h.b16 %v221
    %v409 = vunpack.c.l.b16 %v222
    %v410 = vunpack.c.h.b16 %v222
    %v411 = vunpack.c.l.b16 %v223
    %v412 = vunpack.c.h.b16 %v223
    %v413 = vunpack.c.l.b16 %v224
    %v414 = vunpack.c.h.b16 %v224
    %v415 = vunpack.c.l.b16 %v225
    %v416 = vunpack.c.h.b16 %v225
    %v417 = vunpack.c.l.b16 %v226
    %v418 = vunpack.c.h.b16 %v226
    %v419 = vunpack.c.l.b16 %v227
    %v420 = vunpack.c.h.b16 %v227
    %v421 = vunpack.c.l.b16 %v228
    %v422 = vunpack.c.h.b16 %v228
    %v423 = vunpack.c.l.b16 %v229
    %v424 = vunpack.c.h.b16 %v229
    %v425 = vunpack.c.l.b16 %v230
    %v426 = vunpack.c.h.b16 %v230
    %v427 = vunpack.c.l.b16 %v231
    %v428 = vunpack.c.h.b16 %v231
    %v429 = vunpack.c.l.b16 %v232
    %v430 = vunpack.c.h.b16 %v232
    %v431 = vunpack.c.l.b16 %v233
    %v432 = vunpack.c.h.b16 %v233
    %v433 = vunpack.c.l.b16 %v234
    %v434 = vunpack.c.h.b16 %v234
    %v435 = vunpack.c.l.b16 %v235
    %v436 = vunpack.c.h.b16 %v235
    %v437 = vunpack.c.l.b16 %v236
    %v438 = vunpack.c.h.b16 %v236
    %v439 = vunpack.c.l.b16 %v237
    %v440 = vunpack.c.h.b16 %v237
    %v441 = vunpack.c.l.b16 %v238
    %v442 = vunpack.c.h.b16 %v238
    %v443 = vunpack.c.l.b16 %v239
    %v444 = vunpack.c.h.b16 %v239
    %v445 = vunpack.c.l.b16 %v240
    %v446 = vunpack.c.h.b16 %v240
    %v447 = vunpack.c.l.b16 %v241
    %v448 = vunpack.c.h.b16 %v241
    %v449 = vunpack.c.l.b16 %v242
    %v450 = vunpack.c.h.b16 %v242
    %v451 = vunpack.c.l.b16 %v243
    %v452 = vunpack.c.h.b16 %v243
    %v453 = vunpack.c.l.b16 %v244
    %v454 = vunpack.c.h.b16 %v244
    %v455 = vunpack.c.l.b16 %v245
    %v456 = vunpack.c.h.b16 %v245
    %v457 = vunpack.c.l.b16 %v246
    %v458 = vunpack.c.h.b16 %v246
    %v459 = vunpack.c.l.b16 %v247
    %v460 = vunpack.c.h.b16 %v247
    %v461 = vunpack.c.l.b16 %v248
    %v462 = vunpack.c.h.b16 %v248
    %v463 = vunpack.c.l.b16 %v249
    %v464 = vunpack.c.h.b16 %v249
    %v465 = vunpack.c.l.b16 %v250
    %v466 = vunpack.c.h.b16 %v250
    %v467 = vunpack.c.l.b16 %v251
    %v468 = vunpack.c.h.b16 %v251
    %v469 = vunpack.c.l.b16 %v252
    %v470 = vunpack.c.h.b16 %v252
    %v471 = vunpack.c.l.b16 %v253
    %v472 = vunpack.c.h.b16 %v253
    %v473 = vunpack.c.l.b16 %v254
    %v474 = vunpack.c.h.b16 %v254
    %v475 = vunpack.c.l.b16 %v255
    %v476 = vunpack.c.h.b16 %v255
    %v477 = vunpack.c.l.b16 %v256
    %v478 = vunpack.c.h.b16 %v256
    %v479 = vunpack.c.l.b16 %v257
    %v480 = vunpack.c.h.b16 %v257
    %v481 = vunpack.c.l.b16 %v258
    %v482 = vunpack.c.h.b16 %v258
    %v483 = vunpack.c.l.b16 %v259
    %v484 = vunpack.c.h.b16 %v259
    %v485 = vunpack.c.l.b16 %v260
    %v486 = vunpack.c.h.b16 %v260
    %v487 = vunpack.c.l.b16 %v261
    %v488 = vunpack.c.h.b16 %v261
    %v489 = vunpack.c.l.b16 %v262
    %v490 = vunpack.c.h.b16 %v262
    %v491 = vunpack.c.l.b16 %v263
    %v492 = vunpack.c.h.b16 %v263
    %v493 = vunpack.c.l.b16 %v264
    %v494 = vunpack.c.h.b16 %v264
    %v495 = vunpack.c.l.b16 %v265
    %v496 = vunpack.c.h.b16 %v265
    %v497 = vunpack.c.l.b16 %v266
    %v498 = vunpack.c.h.b16 %v266
    %v499 = vunpack.c.l.b16 %v267
    %v500 = vunpack.c.h.b16 %v267
    %v501 = vunpack.c.l.b16 %v268
    %v502 = vunpack.c.h.b16 %v268
    %v503 = vpack.c.b16 %v383, %v375
    %v504 = vpack.c.b16 %v384, %v376
    %v505 = vpack.c.b16 %v385, %v377
    %v506 = vpack.c.b16 %v386, %v378
    %v507 = vpack.c.b16 %v387, %v379
    %v508 = vpack.c.b16 %v388, %v380
    %v509 = vpack.c.b16 %v389, %v381
    %v510 = vpack.c.b16 %v390, %v382
    %v511 = vpack.c.b16 %v399, %v391
    %v512 = vpack.c.b16 %v400, %v392
    %v513 = vpack.c.b16 %v401, %v393
    %v514 = vpack.c.b16 %v402, %v394
    %v515 = vpack.c.b16 %v403, %v395
    %v516 = vpack.c.b16 %v404, %v396
    %v517 = vpack.c.b16 %v405, %v397
    %v518 = vpack.c.b16 %v406, %v398
    %v519 = vpack.c.b16 %v415, %v407
    %v520 = vpack.c.b16 %v416, %v408
    %v521 = vpack.c.b16 %v417, %v409
    %v522 = vpack.c.b16 %v418, %v410
    %v523 = vpack.c.b16 %v419, %v411
    %v524 = vpack.c.b16 %v420, %v412
    %v525 = vpack.c.b16 %v421, %v413
    %v526 = vpack.c.b16 %v422, %v414
    %v527 = vpack.c.b16 %v431, %v423
    %v528 = vpack.c.b16 %v432, %v424
    %v529 = vpack.c.b16 %v433, %v425
    %v530 = vpack.c.b16 %v434, %v426
    %v531 = vpack.c.b16 %v435, %v427
    %v532 = vpack.c.b16 %v436, %v428
    %v533 = vpack.c.b16 %v437, %v429
    %v534 = vpack.c.b16 %v438, %v430
    %v535 = vpack.c.b16 %v447, %v439
    %v536 = vpack.c.b16 %v448, %v440
    %v537 = vpack.c.b16 %v449, %v441
    %v538 = vpack.c.b16 %v450, %v442
    %v539 = vpack.c.b16 %v451, %v443
    %v540 = vpack.c.b16 %v452, %v444
    %v541 = vpack.c.b16 %v453, %v445
    %v542 = vpack.c.b16 %v454, %v446
    %v543 = vpack.c.b16 %v463, %v455
    %v544 = vpack.c.b16 %v464, %v456
    %v545 = vpack.c.b16 %v465, %v457
    %v546 = vpack.c.b16 %v466, %v458
    %v547 = vpack.c.b16 %v467, %v459
    %v548 = vpack.c.b16 %v468, %v460
    %v549 = vpack.c.b16 %v469, %v461
    %v550 = vpack.c.b16 %v470, %v462
    %v551 = vpack.c.b16 %v479, %v471
    %v552 = vpack.c.b16 %v480, %v472
    %v553 = vpack.c.b16 %v481, %v473
    %v554 = vpack.c.b16 %v482, %v474
    %v555 = vpack.c.b16 %v483, %v475
    %v556 = vpack.c.b16 %v484, %v476
    %v557 = vpack.c.b16 %v485, %v477
    %v558 = vpack.c.b16 %v486, %v478
    %v559 = vpack.c.b16 %v495, %v487
    %v560 = vpack.c.b16 %v496, %v488
    %v561 = vpack.c.b16 %v497, %v489
    %v562 = vpack.c.b16 %v498, %v490
    %v563 = vpack.c.b16 %v499, %v491
    %v564 = vpack.c.b16 %v500, %v492
    %v565 = vpack.c.b16 %v501, %v493
    %v566 = vpack.c.b16 %v502, %v494
    %631 = vmatprep.subr.bf16.mxu0 %v504
    %632 = vmatpush1.bf16.msra.mxu0 %v503
    %633 = vmatprep.subr.bf16.mxu0 %v512
    %634 = vmatpush1.bf16.msra.mxu0 %v511
    %635 = vmatprep.subr.bf16.mxu0 %v520
    %636 = vmatpush1.bf16.msra.mxu0 %v519
    %637 = vmatprep.subr.bf16.mxu0 %v528
    %638 = vmatpush1.bf16.msra.mxu0 %v527
    %639 = vmatprep.subr.bf16.mxu0 %v536
    %640 = vmatpush1.bf16.msra.mxu0 %v535
    %641 = vmatprep.subr.bf16.mxu0 %v544
    %642 = vmatpush1.bf16.msra.mxu0 %v543
    %643 = vmatprep.subr.bf16.mxu0 %v552
    %644 = vmatpush1.bf16.msra.mxu0 %v551
    %645 = vmatprep.subr.bf16.mxu0 %v560
    %646 = vmatpush1.bf16.msra.mxu0 %v559
    %647 = vmatprep.subr.bf16.mxu0 0
    %648 = vmatpush1.bf16.msra.mxu0 0
    %649 = vmatprep.subr.bf16.mxu0 0
    %650 = vmatpush1.bf16.msra.mxu0 0
    %651 = vmatprep.subr.bf16.mxu0 0
    %652 = vmatpush1.bf16.msra.mxu0 0
    %653 = vmatprep.subr.bf16.mxu0 0
    %654 = vmatpush1.bf16.msra.mxu0 0
    %655 = vmatprep.subr.bf16.mxu0 0
    %656 = vmatpush1.bf16.msra.mxu0 0
    %657 = vmatprep.subr.bf16.mxu0 0
    %658 = vmatpush1.bf16.msra.mxu0 0
    %659 = vmatprep.subr.bf16.mxu0 0
    %660 = vmatpush1.bf16.msra.mxu0 0
    %661 = vmatprep.subr.bf16.mxu0 0
    %662 = vmatpush1.bf16.msra.mxu0 0
    %663 = vmatprep.mubr.bf16.mxu0 0
    %664 = vmatmul.mubr.bf16.gmra.mrb[0].mxu0 %v203
    %v665 = vpop.f32.mrb[0].mxu0
    %v666 = vadd.f32 %v274, %v665
    %v667 = vpop.f32.mrb[0].mxu0
    %v668 = vadd.f32 %v278, %v667
    %v669 = vpop.f32.mrb[0].mxu0
    %v670 = vadd.f32 %v274, %v669
    %v671 = vpop.f32.mrb[0].mxu0
    %v672 = vadd.f32 %v278, %v671
    %673 = vmatprep.mubr.bf16.mxu0 0
    %674 = vmatmul.mubr.bf16.gmra.mrb[0].mxu0 %v204
    %v675 = vpop.f32.mrb[0].mxu0
    %v676 = vadd.f32 %v274, %v675
    %v677 = vpop.f32.mrb[0].mxu0
    %v678 = vadd.f32 %v278, %v677
    %v679 = vpop.f32.mrb[0].mxu0
    %v680 = vadd.f32 %v274, %v679
    %v681 = vpop.f32.mrb[0].mxu0
    %v682 = vadd.f32 %v278, %v681
    %683 = vdwg.mxu0
    %684 = vmatprep.subr.bf16.mxu0 %v506
    %685 = vmatpush1.bf16.msra.mxu0 %v505
    %686 = vmatprep.subr.bf16.mxu0 %v514
    %687 = vmatpush1.bf16.msra.mxu0 %v513
    %688 = vmatprep.subr.bf16.mxu0 %v522
    %689 = vmatpush1.bf16.msra.mxu0 %v521
    %690 = vmatprep.subr.bf16.mxu0 %v530
    %691 = vmatpush1.bf16.msra.mxu0 %v529
    %692 = vmatprep.subr.bf16.mxu0 %v538
    %693 = vmatpush1.bf16.msra.mxu0 %v537
    %694 = vmatprep.subr.bf16.mxu0 %v546
    %695 = vmatpush1.bf16.msra.mxu0 %v545
    %696 = vmatprep.subr.bf16.mxu0 %v554
    %697 = vmatpush1.bf16.msra.mxu0 %v553
    %698 = vmatprep.subr.bf16.mxu0 %v562
    %699 = vmatpush1.bf16.msra.mxu0 %v561
    %700 = vmatprep.subr.bf16.mxu0 0
    %701 = vmatpush1.bf16.msra.mxu0 0
    %702 = vmatprep.subr.bf16.mxu0 0
    %703 = vmatpush1.bf16.msra.mxu0 0
    %704 = vmatprep.subr.bf16.mxu0 0
    %705 = vmatpush1.bf16.msra.mxu0 0
    %706 = vmatprep.subr.bf16.mxu0 0
    %707 = vmatpush1.bf16.msra.mxu0 0
    %708 = vmatprep.subr.bf16.mxu0 0
    %709 = vmatpush1.bf16.msra.mxu0 0
    %710 = vmatprep.subr.bf16.mxu0 0
    %711 = vmatpush1.bf16.msra.mxu0 0
    %712 = vmatprep.subr.bf16.mxu0 0
    %713 = vmatpush1.bf16.msra.mxu0 0
    %714 = vmatprep.subr.bf16.mxu0 0
    %715 = vmatpush1.bf16.msra.mxu0 0
    %716 = vmatprep.mubr.bf16.mxu0 0
    %717 = vmatmul.mubr.bf16.gmra.mrb[0].mxu0 %v203
    %v718 = vpop.f32.mrb[0].mxu0
    %v719 = vadd.f32 %v282, %v718
    %v720 = vpop.f32.mrb[0].mxu0
    %v721 = vadd.f32 %v286, %v720
    %v722 = vpop.f32.mrb[0].mxu0
    %v723 = vadd.f32 %v282, %v722
    %v724 = vpop.f32.mrb[0].mxu0
    %v725 = vadd.f32 %v286, %v724
    %726 = vmatprep.mubr.bf16.mxu0 0
    %727 = vmatmul.mubr.bf16.gmra.mrb[0].mxu0 %v204
    %v728 = vpop.f32.mrb[0].mxu0
    %v729 = vadd.f32 %v282, %v728
    %v730 = vpop.f32.mrb[0].mxu0
    %v731 = vadd.f32 %v286, %v730
    %v732 = vpop.f32.mrb[0].mxu0
    %v733 = vadd.f32 %v282, %v732
    %v734 = vpop.f32.mrb[0].mxu0
    %v735 = vadd.f32 %v286, %v734
    %736 = vdwg.mxu0
    %737 = vmatprep.subr.bf16.mxu0 %v508
    %738 = vmatpush1.bf16.msra.mxu0 %v507
    %739 = vmatprep.subr.bf16.mxu0 %v516
    %740 = vmatpush1.bf16.msra.mxu0 %v515
    %741 = vmatprep.subr.bf16.mxu0 %v524
    %742 = vmatpush1.bf16.msra.mxu0 %v523
    %743 = vmatprep.subr.bf16.mxu0 %v532
    %744 = vmatpush1.bf16.msra.mxu0 %v531
    %745 = vmatprep.subr.bf16.mxu0 %v540
    %746 = vmatpush1.bf16.msra.mxu0 %v539
    %747 = vmatprep.subr.bf16.mxu0 %v548
    %748 = vmatpush1.bf16.msra.mxu0 %v547
    %749 = vmatprep.subr.bf16.mxu0 %v556
    %750 = vmatpush1.bf16.msra.mxu0 %v555
    %751 = vmatprep.subr.bf16.mxu0 %v564
    %752 = vmatpush1.bf16.msra.mxu0 %v563
    %753 = vmatprep.subr.bf16.mxu0 0
    %754 = vmatpush1.bf16.msra.mxu0 0
    %755 = vmatprep.subr.bf16.mxu0 0
    %756 = vmatpush1.bf16.msra.mxu0 0
    %757 = vmatprep.subr.bf16.mxu0 0
    %758 = vmatpush1.bf16.msra.mxu0 0
    %759 = vmatprep.subr.bf16.mxu0 0
    %760 = vmatpush1.bf16.msra.mxu0 0
    %761 = vmatprep.subr.bf16.mxu0 0
    %762 = vmatpush1.bf16.msra.mxu0 0
    %763 = vmatprep.subr.bf16.mxu0 0
    %764 = vmatpush1.bf16.msra.mxu0 0
    %765 = vmatprep.subr.bf16.mxu0 0
    %766 = vmatpush1.bf16.msra.mxu0 0
    %767 = vmatprep.subr.bf16.mxu0 0
    %768 = vmatpush1.bf16.msra.mxu0 0
    %769 = vmatprep.mubr.bf16.mxu0 0
    %770 = vmatmul.mubr.bf16.gmra.mrb[0].mxu0 %v203
    %v771 = vpop.f32.mrb[0].mxu0
    %v772 = vadd.f32 %v290, %v771
    %v773 = vpop.f32.mrb[0].mxu0
    %v774 = vadd.f32 %v294, %v773
    %v775 = vpop.f32.mrb[0].mxu0
    %v776 = vadd.f32 %v290, %v775
    %v777 = vpop.f32.mrb[0].mxu0
    %v778 = vadd.f32 %v294, %v777
    %779 = vmatprep.mubr.bf16.mxu0 0
    %780 = vmatmul.mubr.bf16.gmra.mrb[0].mxu0 %v204
    %v781 = vpop.f32.mrb[0].mxu0
    %v782 = vadd.f32 %v290, %v781
    %v783 = vpop.f32.mrb[0].mxu0
    %v784 = vadd.f32 %v294, %v783
    %v785 = vpop.f32.mrb[0].mxu0
    %v786 = vadd.f32 %v290, %v785
    %v787 = vpop.f32.mrb[0].mxu0
    %v788 = vadd.f32 %v294, %v787
    %789 = vdwg.mxu0
    %790 = vmatprep.subr.bf16.mxu0 %v510
    %791 = vmatpush1.bf16.msra.mxu0 %v509
    %792 = vmatprep.subr.bf16.mxu0 %v518
    %793 = vmatpush1.bf16.msra.mxu0 %v517
    %794 = vmatprep.subr.bf16.mxu0 %v526
    %795 = vmatpush1.bf16.msra.mxu0 %v525
    %796 = vmatprep.subr.bf16.mxu0 %v534
    %797 = vmatpush1.bf16.msra.mxu0 %v533
    %798 = vmatprep.subr.bf16.mxu0 %v542
    %799 = vmatpush1.bf16.msra.mxu0 %v541
    %800 = vmatprep.subr.bf16.mxu0 %v550
    %801 = vmatpush1.bf16.msra.mxu0 %v549
    %802 = vmatprep.subr.bf16.mxu0 %v558
    %803 = vmatpush1.bf16.msra.mxu0 %v557
    %804 = vmatprep.subr.bf16.mxu0 %v566
    %805 = vmatpush1.bf16.msra.mxu0 %v565
    %806 = vmatprep.subr.bf16.mxu0 0
    %807 = vmatpush1.bf16.msra.mxu0 0
    %808 = vmatprep.subr.bf16.mxu0 0
    %809 = vmatpush1.bf16.msra.mxu0 0
    %810 = vmatprep.subr.bf16.mxu0 0
    %811 = vmatpush1.bf16.msra.mxu0 0
    %812 = vmatprep.subr.bf16.mxu0 0
    %813 = vmatpush1.bf16.msra.mxu0 0
    %814 = vmatprep.subr.bf16.mxu0 0
    %815 = vmatpush1.bf16.msra.mxu0 0
    %816 = vmatprep.subr.bf16.mxu0 0
    %817 = vmatpush1.bf16.msra.mxu0 0
    %818 = vmatprep.subr.bf16.mxu0 0
    %819 = vmatpush1.bf16.msra.mxu0 0
    %820 = vmatprep.subr.bf16.mxu0 0
    %821 = vmatpush1.bf16.msra.mxu0 0
    %822 = vmatprep.mubr.bf16.mxu0 0
    %823 = vmatmul.mubr.bf16.gmra.mrb[0].mxu0 %v203
    %v824 = vpop.f32.mrb[0].mxu0
    %v825 = vadd.f32 %v298, %v824
    %v826 = vpop.f32.mrb[0].mxu0
    %v827 = vadd.f32 %v302, %v826
    %v828 = vpop.f32.mrb[0].mxu0
    %v829 = vadd.f32 %v298, %v828
    %v830 = vpop.f32.mrb[0].mxu0
    %v831 = vadd.f32 %v302, %v830
    %832 = vmatprep.mubr.bf16.mxu0 0
    %833 = vmatmul.mubr.bf16.gmra.mrb[0].mxu0 %v204
    %v834 = vpop.f32.mrb[0].mxu0
    %v835 = vadd.f32 %v298, %v834
    %v836 = vpop.f32.mrb[0].mxu0
    %v837 = vadd.f32 %v302, %v836
    %v838 = vpop.f32.mrb[0].mxu0
    %v839 = vadd.f32 %v298, %v838
    %v840 = vpop.f32.mrb[0].mxu0
    %v841 = vadd.f32 %v302, %v840
    %842 = vdwg.mxu0
    %v843 = vpack.c.bf16 %v670, %v666
    %v844 = vpack.c.bf16 %v672, %v668
    %v845 = vpack.c.bf16 %v723, %v719
    %v846 = vpack.c.bf16 %v725, %v721
    %v847 = vpack.c.bf16 %v776, %v772
    %v848 = vpack.c.bf16 %v778, %v774
    %v849 = vpack.c.bf16 %v829, %v825
    %v850 = vpack.c.bf16 %v831, %v827
    %v851 = vpack.c.bf16 %v680, %v676
    %v852 = vpack.c.bf16 %v682, %v678
    %v853 = vpack.c.bf16 %v733, %v729
    %v854 = vpack.c.bf16 %v735, %v731
    %v855 = vpack.c.bf16 %v786, %v782
    %v856 = vpack.c.bf16 %v788, %v784
    %v857 = vpack.c.bf16 %v839, %v835
    %v858 = vpack.c.bf16 %v841, %v837
    %v875 = vunpack.c.l.b16 %v843
    %v876 = vunpack.c.l.b16 %v844
    %v877 = vunpack.c.l.b16 %v845
    %v878 = vunpack.c.l.b16 %v846
    %v879 = vunpack.c.l.b16 %v847
    %v880 = vunpack.c.l.b16 %v848
    %v881 = vunpack.c.l.b16 %v849
    %v882 = vunpack.c.l.b16 %v850
    %v883 = vunpack.c.h.b16 %v843
    %v884 = vunpack.c.h.b16 %v844
    %v885 = vunpack.c.h.b16 %v845
    %v886 = vunpack.c.h.b16 %v846
    %v887 = vunpack.c.h.b16 %v847
    %v888 = vunpack.c.h.b16 %v848
    %v889 = vunpack.c.h.b16 %v849
    %v890 = vunpack.c.h.b16 %v850
    %v891 = vunpack.c.l.b16 %v851
    %v892 = vunpack.c.l.b16 %v852
    %v893 = vunpack.c.l.b16 %v853
    %v894 = vunpack.c.l.b16 %v854
    %v895 = vunpack.c.l.b16 %v855
    %v896 = vunpack.c.l.b16 %v856
    %v897 = vunpack.c.l.b16 %v857
    %v898 = vunpack.c.l.b16 %v858
    %v899 = vunpack.c.h.b16 %v851
    %v900 = vunpack.c.h.b16 %v852
    %v901 = vunpack.c.h.b16 %v853
    %v902 = vunpack.c.h.b16 %v854
    %v903 = vunpack.c.h.b16 %v855
    %v904 = vunpack.c.h.b16 %v856
    %v905 = vunpack.c.h.b16 %v857
    %v906 = vunpack.c.h.b16 %v858
    %v907 = vpack.c.b16 %v876, %v875
    %v908 = vpack.c.b16 %v878, %v877
    %v909 = vpack.c.b16 %v880, %v879
    %v910 = vpack.c.b16 %v882, %v881
    %v911 = vpack.c.b16 %v884, %v883
    %v912 = vpack.c.b16 %v886, %v885
    %v913 = vpack.c.b16 %v888, %v887
    %v914 = vpack.c.b16 %v890, %v889
    %v915 = vpack.c.b16 %v892, %v891
    %v916 = vpack.c.b16 %v894, %v893
    %v917 = vpack.c.b16 %v896, %v895
    %v918 = vpack.c.b16 %v898, %v897
    %v919 = vpack.c.b16 %v900, %v899
    %v920 = vpack.c.b16 %v902, %v901
    %v921 = vpack.c.b16 %v904, %v903
    %v922 = vpack.c.b16 %v906, %v905
    %939 = vst [vmem:[#allocation8] sm:$0xff] %v907
    %940 = vst [vmem:[#allocation8 + $0x8] sm:$0xff] %v908
    %941 = vst [vmem:[#allocation8 + $0x10] sm:$0xff] %v909
    %942 = vst [vmem:[#allocation8 + $0x18] sm:$0xff] %v910
    %943 = vst [vmem:[#allocation8 + $0x20] sm:$0xff] %v911
    %944 = vst [vmem:[#allocation8 + $0x28] sm:$0xff] %v912
    %945 = vst [vmem:[#allocation8 + $0x30] sm:$0xff] %v913
    %946 = vst [vmem:[#allocation8 + $0x38] sm:$0xff] %v914
    %947 = vst [vmem:[#allocation8 + $0x40] sm:$0xff] %v915
    %948 = vst [vmem:[#allocation8 + $0x48] sm:$0xff] %v916
    %949 = vst [vmem:[#allocation8 + $0x50] sm:$0xff] %v917
    %950 = vst [vmem:[#allocation8 + $0x58] sm:$0xff] %v918
    %951 = vst [vmem:[#allocation8 + $0x60] sm:$0xff] %v919
    %952 = vst [vmem:[#allocation8 + $0x68] sm:$0xff] %v920
    %953 = vst [vmem:[#allocation8 + $0x70] sm:$0xff] %v921
    %954 = vst [vmem:[#allocation8 + $0x78] sm:$0xff] %v922
    // Predicated region
    $region34: #{tpu_custom_call.1} parent=1 // pred_check
      _
    $region35: #{tpu_custom_call.1} parent=1 // pred_check_branch
      %956 = sbr.rel (0) target = $region37
    $region36: #{tpu_custom_call.1} parent=1 // pred_region
      %s958 = ssub.s32 2048, 2048
      %959 = vsyncadd [#allocation4], %s958
      %s960 = sshll.u32 [#allocation8], 4
      %s961 = int_to_ptr.vmem [resolvable:$true] %s960
      %966 = dma.vmem_to_hbm [thread:$0]  %s961, 2048, %s5, [#allocation4], 512, 512, 32
    $region37: #{tpu_custom_call.1} parent=1 // pred_fallthru
      _
    // Predicated region
    $region38: #{tpu_custom_call.1} parent=1 // pred_check
      _
    $region39: #{tpu_custom_call.1} parent=1 // pred_check_branch
      %968 = sbr.rel (0) target = $region41
    $region40: #{tpu_custom_call.1} parent=1 // pred_region
      %969 = dma.done [#allocation4], 2048
    $region41: #{tpu_custom_call.1} parent=1 // pred_fallthru
      _
    %970 = vsyncpa [#allocation3], 1
    %971 = vsyncpa [#allocation6], 1
    %972 = vsyncpa [#allocation4], 1

</llo_original>
